<compile_context>
chip_gen: v5e
topology: v5e:2x2
jax: 0.10.0
libtpu: 0.0.40
codegen_flags: <defaults>
</compile_context>

<pallas_src>
import functools

import jax
import jax.numpy as jnp
from jax.experimental import pallas as pl
from jax.experimental.pallas import tpu as pltpu


def _round_up(x: int, m: int) -> int:
    return ((x + m - 1) // m) * m


def _make_mlp_kernel(n_hidden_layers: int, compute_dtype):
    """Fused kernel: n_hidden_layers x (linear+relu), then linear + softmax."""

    def kernel(*refs):
        x_ref = refs[0]
        o_ref = refs[-1]
        prefs = refs[1:-1]  # alternating weight / bias refs, output layer last

        # x already arrives in compute_dtype (bf16): no per-step VPU cast, half the
        # x HBM traffic and half the x double-buffer VMEM footprint.
        h = x_ref[...]

        # Hidden stack: relu(linear(x)).  MXU matmul with f32 accumulation; bias add
        # and relu stay f32, activations re-enter the MXU as compute_dtype.
        # NOTE: bf16 re-cast between layers compounds error for very deep stacks;
        # pass compute_dtype=jnp.float32 if accuracy regresses.
        for i in range(n_hidden_layers):
            w = prefs[2 * i][...]               # (K, N_p) compute_dtype
            b = prefs[2 * i + 1][...]           # (1, N_p) f32
            acc = jnp.dot(h, w, preferred_element_type=jnp.float32) + b
            h = jnp.maximum(acc, 0.0).astype(compute_dtype)

        # Output layer (no relu), then numerically-stable softmax over features.
        wo = prefs[-2][...]
        bo = prefs[-1][...]                     # padded lanes carry -1e30 -> exp() == 0
        logits = jnp.dot(h, wo, preferred_element_type=jnp.float32) + bo
        m = jnp.max(logits, axis=-1, keepdims=True)
        e = jnp.exp(logits - m)
        denom = jnp.sum(e, axis=-1, keepdims=True)
        inv = pl.reciprocal(denom, approx=True)  # EUP slot; frees VALU in the epilogue
        o_ref[...] = (e * inv).astype(o_ref.dtype)

    return kernel


def mlp_forward(x, weights_t, biases, *, tile_b: int = 512,
                compute_dtype=jnp.bfloat16, single_buffer_weights: bool = True):
    """x: (B, input_dim) f32.
    weights_t: list of (in, out) matrices — hidden stack then output layer.
    biases:    list of (1, out) rows — same order.
    """
    n_layers_total = len(weights_t)
    n_hidden_layers = n_layers_total - 1
    B, in_dim = x.shape
    out_dim = weights_t[-1].shape[1]

    # ---- feature padding ------------------------------------------------------
    # N dims padded to 128 (lane-dense matmul outputs / unmasked stores).
    # K of the FIRST layer is left unpadded (x block last dim == full array dim is
    # legal) so tiny input widths don't inflate the dominant x HBM stream 4x.
    in_dims = [w.shape[0] for w in weights_t]
    out_dims = [w.shape[1] for w in weights_t]
    out_dims_p = [_round_up(d, 128) for d in out_dims]
    in_dims_p = [in_dims[0]] + out_dims_p[:-1]   # K_i must match padded N_{i-1}
    outL_p = out_dims_p[-1]
    max_np = max(out_dims_p)

    padded_ws, padded_bs = [], []
    for li, (w, b) in enumerate(zip(weights_t, biases)):
        kp, np_ = in_dims_p[li], out_dims_p[li]
        w_p = jnp.pad(w.astype(jnp.float32),
                      ((0, kp - w.shape[0]), (0, np_ - w.shape[1])))
        padded_ws.append(w_p.astype(compute_dtype))
        # Hidden-layer bias padding is 0 (dead lanes); output-layer padding is a large
        # negative so padded classes contribute exp(-inf) == 0 to the softmax.
        pad_val = 0.0 if li < n_hidden_layers else -1e30
        b_p = jnp.pad(b.astype(jnp.float32),
                      ((0, 0), (0, np_ - b.shape[1])),
                      constant_values=pad_val)
        padded_bs.append(b_p)

    # ---- generation-aware VMEM budget -----------------------------------------
    x_itemsize = jnp.dtype(compute_dtype).itemsize
    weight_bytes = sum(int(w.size) * x_itemsize for w in padded_ws)
    bias_bytes = sum(int(b.size) * 4 for b in padded_bs)
    n_weight_bufs = 1 if single_buffer_weights else 2
    resident_bytes = n_weight_bufs * (weight_bytes + bias_bytes)

    try:
        vmem_physical = int(pltpu.get_tpu_info().vmem_capacity_bytes)
    except Exception:
        vmem_physical = 64 << 20                 # conservative fallback (v7x-sized)
    vmem_cap = max(vmem_physical - (16 << 20), 32 << 20)  # leave compiler headroom

    # Per batch-row VMEM cost: double-buffered x tile + double-buffered out tile +
    # f32 working activations/logits inside the body.
    per_row = (2 * in_dim * x_itemsize
               + 2 * outL_p * 4
               + 2 * max_np * 4)
    avail = max(vmem_cap - resident_bytes - (4 << 20), per_row * 16)
    vmem_tile_max = max(16, (avail // per_row) // 16 * 16)
    # TODO(synk): if resident weights ever exceed the v7x budget (~40 MiB bf16),
    # add a grid axis over the hidden dim instead of keeping all layers resident.

    # ---- batch tiling (bf16 sublane-pack aligned, grid over batch) -------------
    B_align = _round_up(B, 16)
    tile_b = max(16, (min(tile_b, 1024, vmem_tile_max, B_align) // 16) * 16)
    # Keep >= 2 grid steps when the batch allows: feeds both TensorCores on v7x
    # under "parallel" semantics and gives the pipeline something to overlap.
    if tile_b >= B_align and B_align >= 32:
        tile_b = max(16, _round_up(B_align // 2, 16))
    B_p = _round_up(B, tile_b)
    grid = (B_p // tile_b,)

    x_p = jnp.pad(x, ((0, B_p - B), (0, 0))).astype(compute_dtype)

    # ---- specs ------------------------------------------------------------------
    operands = [x_p]
    in_specs = [pl.BlockSpec((tile_b, in_dim), lambda i: (i, 0))]
    weight_mode = pl.Buffered(n_weight_bufs)     # constant blocks: no wasted 2nd buffer
    for w_p, b_p in zip(padded_ws, padded_bs):
        operands.append(w_p)
        in_specs.append(pl.BlockSpec(w_p.shape, lambda i: (0, 0),
                                     pipeline_mode=weight_mode))
        operands.append(b_p)
        in_specs.append(pl.BlockSpec(b_p.shape, lambda i: (0, 0),
                                     pipeline_mode=weight_mode))
    out_specs = pl.BlockSpec((tile_b, outL_p), lambda i: (i, 0))

    # Only the per-step streams need the x2 double-buffer multiplier.
    needed = resident_bytes + tile_b * per_row + (8 << 20)
    vmem_limit = int(min(vmem_cap, max(needed, 32 << 20)))

    flops = 2 * B_p * sum(kp * np_ for kp, np_ in zip(in_dims_p, out_dims_p))
    bytes_accessed = (int(x_p.size) * x_itemsize + weight_bytes + bias_bytes
                      + B_p * outL_p * 4)
    cost = pl.CostEstimate(flops=int(flops),
                           transcendentals=int(B_p * (outL_p + 1)),
                           bytes_accessed=int(bytes_accessed))

    kernel = _make_mlp_kernel(n_hidden_layers, compute_dtype)

    out_p = pl.pallas_call(
        kernel,
        out_shape=jax.ShapeDtypeStruct((B_p, outL_p), jnp.float32),
        grid=grid,
        in_specs=in_specs,
        out_specs=out_specs,
        compiler_params=pltpu.CompilerParams(
            dimension_semantics=("parallel",),
            vmem_limit_bytes=vmem_limit),
        cost_estimate=cost,
    )(*operands)

    return out_p[:B, :out_dim]


def init_mlp_params(key, input_dim, hidden_dim, output_dim, n_layers,
                    input_std_init=1.0, output_std_init=1.0):
    """Deterministic parameter init matching MLP.__init__ (weights ~ N(0, std), biases = 0).
    Returns weights already transposed to (in, out)."""
    keys = jax.random.split(key, n_layers + 1)
    weights_t, biases = [], []

    # Input layer: W (hidden, input), std = input_std_init / sqrt(input_dim)
    std0 = input_std_init / jnp.sqrt(jnp.float32(input_dim))
    w = jax.random.normal(keys[0], (hidden_dim, input_dim), jnp.float32) * std0
    weights_t.append(w.T)
    biases.append(jnp.zeros((1, hidden_dim), jnp.float32))

    # Hidden layers: W (hidden, hidden), std = output_std_init / sqrt(fan_in)
    for i in range(n_layers - 1):
        fan_in = hidden_dim
        std = output_std_init / jnp.sqrt(jnp.float32(fan_in))
        w = jax.random.normal(keys[1 + i], (hidden_dim, hidden_dim), jnp.float32) * std
        weights_t.append(w.T)
        biases.append(jnp.zeros((1, hidden_dim), jnp.float32))

    # Output layer: W (output, hidden), std = output_std_init / sqrt(hidden_dim)
    std_o = output_std_init / jnp.sqrt(jnp.float32(hidden_dim))
    w = jax.random.normal(keys[-1], (output_dim, hidden_dim), jnp.float32) * std_o
    weights_t.append(w.T)
    biases.append(jnp.zeros((1, output_dim), jnp.float32))

    return weights_t, biases


def mlp_reference(x, weights_t, biases):
    h = x
    for w, b in zip(weights_t[:-1], biases[:-1]):
        h = jnp.maximum(h @ w + b, 0.0)
    logits = h @ weights_t[-1] + biases[-1]
    return jax.nn.softmax(logits, axis=-1)


if __name__ == "__main__":
    # Small shapes consistent with the module's forward (2-D input (batch, input_dim));
    # batch=256 exercises a 2-step "parallel" grid after the >=2-steps clamp.
    batch, input_dim, hidden_dim, output_dim, n_layers = 256, 32, 64, 10, 2

    key = jax.random.PRNGKey(0)
    kx, kp = jax.random.split(key)
    x = jax.random.normal(kx, (batch, input_dim), jnp.float32)
    weights_t, biases = init_mlp_params(kp, input_dim, hidden_dim, output_dim, n_layers)

    fwd = jax.jit(functools.partial(mlp_forward))
    out = fwd(x, weights_t, biases)
    out = jax.block_until_ready(out)

    ref = mlp_reference(x, weights_t, biases)
    assert out.shape == (batch, output_dim)
    assert out.dtype == jnp.float32
    # bf16 matmuls + approx reciprocal -> loosen tolerance vs the f32 reference.
    assert jnp.allclose(out, ref, atol=2e-2, rtol=2e-2), float(jnp.max(jnp.abs(out - ref)))
    assert jnp.allclose(jnp.sum(out, axis=-1), 1.0, atol=1e-2)

    print("KERNEL_OK")
</pallas_src>

<mosaic_0001>
module attributes {stable_mosaic.version = 11 : i64} {
  func.func @kernel(%arg0: i32, %arg1: memref<128x32xbf16, #tpu.memory_space<vmem>>, %arg2: memref<32x128xbf16, #tpu.memory_space<vmem>>, %arg3: memref<1x128xf32, #tpu.memory_space<vmem>>, %arg4: memref<128x128xbf16, #tpu.memory_space<vmem>>, %arg5: memref<1x128xf32, #tpu.memory_space<vmem>>, %arg6: memref<128x128xbf16, #tpu.memory_space<vmem>>, %arg7: memref<1x128xf32, #tpu.memory_space<vmem>>, %arg8: memref<128x128xf32, #tpu.memory_space<vmem>>) attributes {dimension_semantics = [#tpu.dimension_semantics<parallel>], iteration_bounds = array<i64: 2>, scalar_prefetch = 0 : i64, scratch_operands = 0 : i64, tpu.core_type = #tpu.core_type<tc>, window_params = [{transform_indices = @transform_0, window_bounds = array<i64: 128, 32>}, {pipeline_mode = #tpu.pipeline_mode<synchronous>, transform_indices = @transform_1, window_bounds = array<i64: 32, 128>}, {pipeline_mode = #tpu.pipeline_mode<synchronous>, transform_indices = @transform_2, window_bounds = array<i64: 1, 128>}, {pipeline_mode = #tpu.pipeline_mode<synchronous>, transform_indices = @transform_3, window_bounds = array<i64: 128, 128>}, {pipeline_mode = #tpu.pipeline_mode<synchronous>, transform_indices = @transform_4, window_bounds = array<i64: 1, 128>}, {pipeline_mode = #tpu.pipeline_mode<synchronous>, transform_indices = @transform_5, window_bounds = array<i64: 128, 128>}, {pipeline_mode = #tpu.pipeline_mode<synchronous>, transform_indices = @transform_6, window_bounds = array<i64: 1, 128>}, {transform_indices = @transform_7, window_bounds = array<i64: 128, 128>}]} {
    %c0 = arith.constant 0 : index
    %c0_0 = arith.constant 0 : index
    %0 = vector.load %arg1[%c0, %c0_0] : memref<128x32xbf16, #tpu.memory_space<vmem>>, vector<128x32xbf16>
    %c0_1 = arith.constant 0 : index
    %c0_2 = arith.constant 0 : index
    %1 = vector.load %arg2[%c0_1, %c0_2] : memref<32x128xbf16, #tpu.memory_space<vmem>>, vector<32x128xbf16>
    %c0_3 = arith.constant 0 : index
    %c0_4 = arith.constant 0 : index
    %2 = vector.load %arg3[%c0_3, %c0_4] : memref<1x128xf32, #tpu.memory_space<vmem>>, vector<1x128xf32>
    %cst = arith.constant dense<0.000000e+00> : vector<128x128xf32>
    %3 = tpu.matmul %0, %1, %cst {dimension_numbers = #tpu.dot_dimension_numbers<[1], [0], [0], [1], [0, 0, 1, 1], [], []>} : vector<128x32xbf16>, vector<32x128xbf16>, vector<128x128xf32> -> vector<128x128xf32>
    %4 = vector.broadcast %2 : vector<1x128xf32> to vector<128x128xf32>
    %5 = arith.addf %3, %4 : vector<128x128xf32>
    %cst_5 = arith.constant 0.000000e+00 : f32
    %6 = vector.broadcast %cst_5 : f32 to vector<128x128xf32>
    %7 = arith.maximumf %5, %6 : vector<128x128xf32>
    %8 = arith.truncf %7 : vector<128x128xf32> to vector<128x128xbf16>
    %c0_6 = arith.constant 0 : index
    %c0_7 = arith.constant 0 : index
    %9 = vector.load %arg4[%c0_6, %c0_7] : memref<128x128xbf16, #tpu.memory_space<vmem>>, vector<128x128xbf16>
    %c0_8 = arith.constant 0 : index
    %c0_9 = arith.constant 0 : index
    %10 = vector.load %arg5[%c0_8, %c0_9] : memref<1x128xf32, #tpu.memory_space<vmem>>, vector<1x128xf32>
    %cst_10 = arith.constant dense<0.000000e+00> : vector<128x128xf32>
    %11 = tpu.matmul %8, %9, %cst_10 {dimension_numbers = #tpu.dot_dimension_numbers<[1], [0], [0], [1], [0, 0, 1, 1], [], []>} : vector<128x128xbf16>, vector<128x128xbf16>, vector<128x128xf32> -> vector<128x128xf32>
    %12 = vector.broadcast %10 : vector<1x128xf32> to vector<128x128xf32>
    %13 = arith.addf %11, %12 : vector<128x128xf32>
    %cst_11 = arith.constant 0.000000e+00 : f32
    %14 = vector.broadcast %cst_11 : f32 to vector<128x128xf32>
    %15 = arith.maximumf %13, %14 : vector<128x128xf32>
    %16 = arith.truncf %15 : vector<128x128xf32> to vector<128x128xbf16>
    %c0_12 = arith.constant 0 : index
    %c0_13 = arith.constant 0 : index
    %17 = vector.load %arg6[%c0_12, %c0_13] : memref<128x128xbf16, #tpu.memory_space<vmem>>, vector<128x128xbf16>
    %c0_14 = arith.constant 0 : index
    %c0_15 = arith.constant 0 : index
    %18 = vector.load %arg7[%c0_14, %c0_15] : memref<1x128xf32, #tpu.memory_space<vmem>>, vector<1x128xf32>
    %cst_16 = arith.constant dense<0.000000e+00> : vector<128x128xf32>
    %19 = tpu.matmul %16, %17, %cst_16 {dimension_numbers = #tpu.dot_dimension_numbers<[1], [0], [0], [1], [0, 0, 1, 1], [], []>} : vector<128x128xbf16>, vector<128x128xbf16>, vector<128x128xf32> -> vector<128x128xf32>
    %20 = vector.broadcast %18 : vector<1x128xf32> to vector<128x128xf32>
    %21 = arith.addf %19, %20 : vector<128x128xf32>
    %cst_17 = arith.constant dense<0xFF800000> : vector<128xf32>
    %22 = vector.multi_reduction <maximumf>, %21, %cst_17 [1] : vector<128x128xf32> to vector<128xf32>
    %23 = vector.shape_cast %22 : vector<128xf32> to vector<128x1xf32>
    %24 = vector.broadcast %23 : vector<128x1xf32> to vector<128x128xf32>
    %25 = arith.subf %21, %24 : vector<128x128xf32>
    %26 = math.exp %25 : vector<128x128xf32>
    %cst_18 = arith.constant dense<0.000000e+00> : vector<128xf32>
    %27 = vector.multi_reduction <add>, %26, %cst_18 [1] : vector<128x128xf32> to vector<128xf32>
    %28 = vector.shape_cast %27 : vector<128xf32> to vector<128x1xf32>
    %29 = tpu.reciprocal %28 {approx = true} : vector<128x1xf32> -> vector<128x1xf32>
    %30 = vector.broadcast %29 : vector<128x1xf32> to vector<128x128xf32>
    %31 = arith.mulf %26, %30 : vector<128x128xf32>
    %c0_19 = arith.constant 0 : index
    %c0_20 = arith.constant 0 : index
    %32 = vector.load %arg8[%c0_19, %c0_20] : memref<128x128xf32, #tpu.memory_space<vmem>>, vector<128x128xf32>
    tpu.vector_store %arg8[%c0_19, %c0_20], %31 {strides = array<i32>} : memref<128x128xf32, #tpu.memory_space<vmem>>, vector<128x128xf32>,
    return
  }
  func.func @transform_0(%arg0: i32) -> (i32, i32) {
    %c0_i32 = arith.constant 0 : i32
    %c0_i32_0 = arith.constant 0 : i32
    return %arg0, %c0_i32 : i32, i32
  }
  func.func @transform_1(%arg0: i32) -> (i32, i32) {
    %c0_i32 = arith.constant 0 : i32
    %c0_i32_0 = arith.constant 0 : i32
    %c0_i32_1 = arith.constant 0 : i32
    return %c0_i32, %c0_i32_0 : i32, i32
  }
  func.func @transform_2(%arg0: i32) -> (i32, i32) {
    %c0_i32 = arith.constant 0 : i32
    %c0_i32_0 = arith.constant 0 : i32
    %c0_i32_1 = arith.constant 0 : i32
    return %c0_i32, %c0_i32_0 : i32, i32
  }
  func.func @transform_3(%arg0: i32) -> (i32, i32) {
    %c0_i32 = arith.constant 0 : i32
    %c0_i32_0 = arith.constant 0 : i32
    %c0_i32_1 = arith.constant 0 : i32
    return %c0_i32, %c0_i32_0 : i32, i32
  }
  func.func @transform_4(%arg0: i32) -> (i32, i32) {
    %c0_i32 = arith.constant 0 : i32
    %c0_i32_0 = arith.constant 0 : i32
    %c0_i32_1 = arith.constant 0 : i32
    return %c0_i32, %c0_i32_0 : i32, i32
  }
  func.func @transform_5(%arg0: i32) -> (i32, i32) {
    %c0_i32 = arith.constant 0 : i32
    %c0_i32_0 = arith.constant 0 : i32
    %c0_i32_1 = arith.constant 0 : i32
    return %c0_i32, %c0_i32_0 : i32, i32
  }
  func.func @transform_6(%arg0: i32) -> (i32, i32) {
    %c0_i32 = arith.constant 0 : i32
    %c0_i32_0 = arith.constant 0 : i32
    %c0_i32_1 = arith.constant 0 : i32
    return %c0_i32, %c0_i32_0 : i32, i32
  }
  func.func @transform_7(%arg0: i32) -> (i32, i32) {
    %c0_i32 = arith.constant 0 : i32
    %c0_i32_0 = arith.constant 0 : i32
    return %arg0, %c0_i32 : i32, i32
  }
}

</mosaic_0001>

<llo_original>
// kernel: mlp_forward.1
$region0: #{mlp_forward.1}
  #allocation0 [shape = 'u32[]', space=smem, size = 0x4, offset = 0x4, fixed_abs, tag = 'smem constant byte address 0x4 - core index']
  #allocation1 [shape = 'u32[72,128]{1,0:T(1,128)}', space=vmem, size = 0x9000, scoped, tag = 'internal scratch']
  %s0 = inlined_call_operand.vmem [shape: bf16[256,32], index: 0, kind: input, shape index: {}]
  %s1 = inlined_call_operand.vmem [shape: bf16[32,128], index: 1, kind: input, shape index: {}]
  %s2 = inlined_call_operand.vmem [shape: f32[1,128], index: 2, kind: input, shape index: {}]
  %s3 = inlined_call_operand.vmem [shape: bf16[128,128], index: 3, kind: input, shape index: {}]
  %s4 = inlined_call_operand.vmem [shape: f32[1,128], index: 4, kind: input, shape index: {}]
  %s5 = inlined_call_operand.vmem [shape: bf16[128,128], index: 5, kind: input, shape index: {}]
  %s6 = inlined_call_operand.vmem [shape: f32[1,128], index: 6, kind: input, shape index: {}]
  %s7 = inlined_call_operand.vmem [shape: f32[256,128], index: 7, kind: output, shape index: {}]
  %s8 = sld [smem:[#allocation0]]
  $region61: #{mlp_forward.1} parent=0
    _
  %s10 = ssub.s32 1, %s8
  %s11 = scalar_select 0, %s10, %s8
  loop: start=0, step=1, limit=4
  $region2: #{mlp_forward.1} parent=0 // loop_pre_header
    _
  $region3: #{mlp_forward.1} parent=0 // loop_header
    %s13 = sphi 0, %s17
    %p14 = scmp.ge.s32.totalorder %s13, 4
    %s23 = sphi 0, %s25
    %s26 = sphi 0, %s23
    %s27 = sphi 0, %s26
    %s43 = sphi 0, %s27
    %s47 = sphi 0, %s47
    %s49 = sphi 0, %s47
    %s50 = sphi 0, %s49
    %s64 = sphi 0, %s50
    %s68 = sphi 0, %s68
    %s70 = sphi 0, %s68
    %s71 = sphi 0, %s70
    %s85 = sphi 0, %s71
    %s89 = sphi 0, %s89
    %s91 = sphi 0, %s89
    %s92 = sphi 0, %s91
    %s106 = sphi 0, %s92
    %s110 = sphi 0, %s110
    %s112 = sphi 0, %s110
    %s113 = sphi 0, %s112
    %s127 = sphi 0, %s113
    %s131 = sphi 0, %s131
    %s133 = sphi 0, %s131
    %s134 = sphi 0, %s133
    %s148 = sphi 0, %s134
    %s152 = sphi 0, %s152
    %s154 = sphi 0, %s152
    %s155 = sphi 0, %s154
    %s169 = sphi 0, %s155
    %s175 = sphi 0, %s177
    %s178 = sphi 0, %s175
    %s179 = sphi 0, %s178
    %s195 = sphi 0, %s179
  $region4: #{mlp_forward.1} parent=0 // loop_header_branch
    %16 = sbr.rel (%p14) target = $region8
  $region5: #{mlp_forward.1} parent=0 // loop_body
    %s18 = ssub.s32 %s13, 1
    %s19 = ssub.s32 %s13, 2
    %s20 = sadd.s32 %s13, 1
    %s21 = ssub.s32 %s13, %s20
    %p22 = scmp.eq.s32.totalorder %s21, 0
    %s24 = sadd.s32 %s23, 1
    %s25 = scalar_select %p22, %s23, %s24
    %p28 = pneg %p22
    %p29 = scmp.eq.s32.totalorder %s13, 1
    %p30 = por %p28, %p29
    %p31 = scmp.ne.s32.totalorder %s23, %s26
    %p32 = scmp.eq.s32.totalorder %s13, 0
    %p33 = por %p31, %p32
    %p34 = scmp.ne.s32.totalorder %s23, %s26
    %p35 = scmp.eq.s32.totalorder %s18, 1
    %p36 = por %p34, %p35
    %p37 = scmp.ne.s32.totalorder %s26, %s27
    %p38 = scmp.eq.s32.totalorder %s18, 0
    %p39 = por %p37, %p38
    %p40 = scmp.ne.s32.totalorder %s26, %s27
    %p41 = scmp.eq.s32.totalorder %s19, 1
    %p42 = por %p40, %p41
    %p44 = scmp.ne.s32.totalorder %s27, %s43
    %p45 = scmp.eq.s32.totalorder %s19, 0
    %p46 = por %p44, %p45
    %s48 = sadd.s32 %s47, 1
    %p51 = scmp.eq.s32.totalorder %s13, 1
    %p52 = scmp.ne.s32.totalorder %s47, %s49
    %p53 = scmp.eq.s32.totalorder %s13, 0
    %p54 = por %p52, %p53
    %p55 = scmp.ne.s32.totalorder %s47, %s49
    %p56 = scmp.eq.s32.totalorder %s18, 1
    %p57 = por %p55, %p56
    %p58 = scmp.ne.s32.totalorder %s49, %s50
    %p59 = scmp.eq.s32.totalorder %s18, 0
    %p60 = por %p58, %p59
    %p61 = scmp.ne.s32.totalorder %s49, %s50
    %p62 = scmp.eq.s32.totalorder %s19, 1
    %p63 = por %p61, %p62
    %p65 = scmp.ne.s32.totalorder %s50, %s64
    %p66 = scmp.eq.s32.totalorder %s19, 0
    %p67 = por %p65, %p66
    %s69 = sadd.s32 %s68, 1
    %p72 = scmp.eq.s32.totalorder %s13, 1
    %p73 = scmp.ne.s32.totalorder %s68, %s70
    %p74 = scmp.eq.s32.totalorder %s13, 0
    %p75 = por %p73, %p74
    %p76 = scmp.ne.s32.totalorder %s68, %s70
    %p77 = scmp.eq.s32.totalorder %s18, 1
    %p78 = por %p76, %p77
    %p79 = scmp.ne.s32.totalorder %s70, %s71
    %p80 = scmp.eq.s32.totalorder %s18, 0
    %p81 = por %p79, %p80
    %p82 = scmp.ne.s32.totalorder %s70, %s71
    %p83 = scmp.eq.s32.totalorder %s19, 1
    %p84 = por %p82, %p83
    %p86 = scmp.ne.s32.totalorder %s71, %s85
    %p87 = scmp.eq.s32.totalorder %s19, 0
    %p88 = por %p86, %p87
    %s90 = sadd.s32 %s89, 1
    %p93 = scmp.eq.s32.totalorder %s13, 1
    %p94 = scmp.ne.s32.totalorder %s89, %s91
    %p95 = scmp.eq.s32.totalorder %s13, 0
    %p96 = por %p94, %p95
    %p97 = scmp.ne.s32.totalorder %s89, %s91
    %p98 = scmp.eq.s32.totalorder %s18, 1
    %p99 = por %p97, %p98
    %p100 = scmp.ne.s32.totalorder %s91, %s92
    %p101 = scmp.eq.s32.totalorder %s18, 0
    %p102 = por %p100, %p101
    %p103 = scmp.ne.s32.totalorder %s91, %s92
    %p104 = scmp.eq.s32.totalorder %s19, 1
    %p105 = por %p103, %p104
    %p107 = scmp.ne.s32.totalorder %s92, %s106
    %p108 = scmp.eq.s32.totalorder %s19, 0
    %p109 = por %p107, %p108
    %s111 = sadd.s32 %s110, 1
    %p114 = scmp.eq.s32.totalorder %s13, 1
    %p115 = scmp.ne.s32.totalorder %s110, %s112
    %p116 = scmp.eq.s32.totalorder %s13, 0
    %p117 = por %p115, %p116
    %p118 = scmp.ne.s32.totalorder %s110, %s112
    %p119 = scmp.eq.s32.totalorder %s18, 1
    %p120 = por %p118, %p119
    %p121 = scmp.ne.s32.totalorder %s112, %s113
    %p122 = scmp.eq.s32.totalorder %s18, 0
    %p123 = por %p121, %p122
    %p124 = scmp.ne.s32.totalorder %s112, %s113
    %p125 = scmp.eq.s32.totalorder %s19, 1
    %p126 = por %p124, %p125
    %p128 = scmp.ne.s32.totalorder %s113, %s127
    %p129 = scmp.eq.s32.totalorder %s19, 0
    %p130 = por %p128, %p129
    %s132 = sadd.s32 %s131, 1
    %p135 = scmp.eq.s32.totalorder %s13, 1
    %p136 = scmp.ne.s32.totalorder %s131, %s133
    %p137 = scmp.eq.s32.totalorder %s13, 0
    %p138 = por %p136, %p137
    %p139 = scmp.ne.s32.totalorder %s131, %s133
    %p140 = scmp.eq.s32.totalorder %s18, 1
    %p141 = por %p139, %p140
    %p142 = scmp.ne.s32.totalorder %s133, %s134
    %p143 = scmp.eq.s32.totalorder %s18, 0
    %p144 = por %p142, %p143
    %p145 = scmp.ne.s32.totalorder %s133, %s134
    %p146 = scmp.eq.s32.totalorder %s19, 1
    %p147 = por %p145, %p146
    %p149 = scmp.ne.s32.totalorder %s134, %s148
    %p150 = scmp.eq.s32.totalorder %s19, 0
    %p151 = por %p149, %p150
    %s153 = sadd.s32 %s152, 1
    %p156 = scmp.eq.s32.totalorder %s13, 1
    %p157 = scmp.ne.s32.totalorder %s152, %s154
    %p158 = scmp.eq.s32.totalorder %s13, 0
    %p159 = por %p157, %p158
    %p160 = scmp.ne.s32.totalorder %s152, %s154
    %p161 = scmp.eq.s32.totalorder %s18, 1
    %p162 = por %p160, %p161
    %p163 = scmp.ne.s32.totalorder %s154, %s155
    %p164 = scmp.eq.s32.totalorder %s18, 0
    %p165 = por %p163, %p164
    %p166 = scmp.ne.s32.totalorder %s154, %s155
    %p167 = scmp.eq.s32.totalorder %s19, 1
    %p168 = por %p166, %p167
    %p170 = scmp.ne.s32.totalorder %s155, %s169
    %p171 = scmp.eq.s32.totalorder %s19, 0
    %p172 = por %p170, %p171
    %s173 = ssub.s32 %s13, %s20
    %p174 = scmp.eq.s32.totalorder %s173, 0
    %s176 = sadd.s32 %s175, 1
    %s177 = scalar_select %p174, %s175, %s176
    %p180 = pneg %p174
    %p181 = scmp.eq.s32.totalorder %s13, 1
    %p182 = por %p180, %p181
    %p183 = scmp.ne.s32.totalorder %s175, %s178
    %p184 = scmp.eq.s32.totalorder %s13, 0
    %p185 = por %p183, %p184
    %p186 = scmp.ne.s32.totalorder %s175, %s178
    %p187 = scmp.eq.s32.totalorder %s18, 1
    %p188 = por %p186, %p187
    %p189 = scmp.ne.s32.totalorder %s178, %s179
    %p190 = scmp.eq.s32.totalorder %s18, 0
    %p191 = por %p189, %p190
    %p192 = scmp.ne.s32.totalorder %s178, %s179
    %p193 = scmp.eq.s32.totalorder %s19, 1
    %p194 = por %p192, %p193
    %p196 = scmp.ne.s32.totalorder %s179, %s195
    %p197 = scmp.eq.s32.totalorder %s19, 0
    %p198 = por %p196, %p197
    %p199 = scmp.le.s32.totalorder 1, %s13
    %p200 = scmp.lt.s32.totalorder %s13, 3
    %p201 = pnand %p199, %p200
    %p202 = pneg %p201
    // Predicated region
    $region9: #{mlp_forward.1} parent=5 // pred_check
      _
    $region10: #{mlp_forward.1} parent=5 // pred_check_branch
      %204 = sbr.rel (%p201) target = $region12
    $region11: #{mlp_forward.1} parent=5 // pred_region
      %s205 = ssub.s32 %s13, 1
      // Predicated region
      $region13: #{mlp_forward.1} parent=11 // pred_check
        %p206 = pneg %p60
      $region14: #{mlp_forward.1} parent=11 // pred_check_branch
        %208 = sbr.rel (%p206) target = $region16
      $region15: #{mlp_forward.1} parent=11 // pred_region
        _
      $region16: #{mlp_forward.1} parent=11 // pred_fallthru
        _
      // Predicated region
      $region17: #{mlp_forward.1} parent=11 // pred_check
        %p209 = pneg %p81
      $region18: #{mlp_forward.1} parent=11 // pred_check_branch
        %211 = sbr.rel (%p209) target = $region20
      $region19: #{mlp_forward.1} parent=11 // pred_region
        _
      $region20: #{mlp_forward.1} parent=11 // pred_fallthru
        _
      // Predicated region
      $region21: #{mlp_forward.1} parent=11 // pred_check
        %p212 = pneg %p102
      $region22: #{mlp_forward.1} parent=11 // pred_check_branch
        %214 = sbr.rel (%p212) target = $region24
      $region23: #{mlp_forward.1} parent=11 // pred_region
        _
      $region24: #{mlp_forward.1} parent=11 // pred_fallthru
        _
      // Predicated region
      $region25: #{mlp_forward.1} parent=11 // pred_check
        %p215 = pneg %p123
      $region26: #{mlp_forward.1} parent=11 // pred_check_branch
        %217 = sbr.rel (%p215) target = $region28
      $region27: #{mlp_forward.1} parent=11 // pred_region
        _
      $region28: #{mlp_forward.1} parent=11 // pred_fallthru
        _
      // Predicated region
      $region29: #{mlp_forward.1} parent=11 // pred_check
        %p218 = pneg %p144
      $region30: #{mlp_forward.1} parent=11 // pred_check_branch
        %220 = sbr.rel (%p218) target = $region32
      $region31: #{mlp_forward.1} parent=11 // pred_region
        _
      $region32: #{mlp_forward.1} parent=11 // pred_fallthru
        _
      // Predicated region
      $region33: #{mlp_forward.1} parent=11 // pred_check
        %p221 = pneg %p165
      $region34: #{mlp_forward.1} parent=11 // pred_check_branch
        %223 = sbr.rel (%p221) target = $region36
      $region35: #{mlp_forward.1} parent=11 // pred_region
        _
      $region36: #{mlp_forward.1} parent=11 // pred_fallthru
        _
    $region12: #{mlp_forward.1} parent=5 // pred_fallthru
      _
    %p224 = scmp.lt.s32.totalorder %s13, 2
    // Predicated region
    $region37: #{mlp_forward.1} parent=5 // pred_check
      %p225 = pneg %p224
    $region38: #{mlp_forward.1} parent=5 // pred_check_branch
      %227 = sbr.rel (%p225) target = $region40
    $region39: #{mlp_forward.1} parent=5 // pred_region
      // Predicated region
      $region41: #{mlp_forward.1} parent=39 // pred_check
        %p228 = pneg %p33
      $region42: #{mlp_forward.1} parent=39 // pred_check_branch
        %230 = sbr.rel (%p228) target = $region44
      $region43: #{mlp_forward.1} parent=39 // pred_region
        %s231 = smul.u32 16, %s13
        %p232 = scmp.lt.s32.totalorder %s231, 31
        %s233 = scalar_select %p232, %s231, 31
        %s234 = smul.addr %s233, 4
        %s235 = scalar_lea.vmem %s0, %s234
        %s236 = smul.u32 16, %s13
      $region44: #{mlp_forward.1} parent=39 // pred_fallthru
        _
    $region40: #{mlp_forward.1} parent=5 // pred_fallthru
      _
    %p237 = scmp.le.s32.totalorder 1, %s13
    %p238 = scmp.lt.s32.totalorder %s13, 3
    %p239 = pnand %p237, %p238
    %p240 = pneg %p239
    // Predicated region
    $region45: #{mlp_forward.1} parent=5 // pred_check
      _
    $region46: #{mlp_forward.1} parent=5 // pred_check_branch
      %242 = sbr.rel (%p239) target = $region48
    $region47: #{mlp_forward.1} parent=5 // pred_region
      %s243 = ssub.s32 %s13, 1
      %s244 = smul.u32 16, %s18
      %p245 = scmp.lt.s32.totalorder %s244, 31
      %s246 = scalar_select %p245, %s244, 31
      %s247 = smul.addr %s246, 4
      %s248 = scalar_lea.vmem %s0, %s247
      %p249 = pneg %p39
      %p250 = pneg %p36
      %p251 = pneg %p60
      %p252 = pneg %p57
      %p253 = pneg %p81
      %p254 = pneg %p78
      %p255 = pneg %p102
      %p256 = pneg %p99
      %p257 = pneg %p123
      %p258 = pneg %p120
      %p259 = pneg %p144
      %p260 = pneg %p141
      %p261 = pneg %p165
      %p262 = pneg %p162
      %p263 = pneg %p191
      %p264 = pneg %p188
      %s265 = smul.u32 16, %s18
      %p266 = scmp.lt.s32.totalorder %s265, 31
      %s267 = scalar_select %p266, %s265, 31
      %s268 = smul.addr %s267, 8
      %s269 = scalar_lea.vmem %s7, %s268
      %s270 = smul.u32 16, %s18
      %p271 = scmp.lt.s32.totalorder %s270, 31
      %s272 = scalar_select %p271, %s270, 31
      %s273 = smul.addr %s272, 4
      %s274 = scalar_lea.vmem %s0, %s273
      %s275 = smul.u32 16, %s18
      %s276 = smul.u32 16, %s18
      %p277 = scmp.lt.s32.totalorder %s276, 31
      %s278 = scalar_select %p277, %s276, 31
      %s279 = smul.addr %s278, 8
      %s280 = scalar_lea.vmem %s7, %s279
      %s281 = smul.u32 16, %s18
      %v283 = vld [vmem:[%s274] sm:$0xf]
      %v284 = vld [vmem:[%s274 + $0x4] sm:$0xf]
      %v285 = vld [vmem:[%s274 + $0x8] sm:$0xf]
      %v286 = vld [vmem:[%s274 + $0xc] sm:$0xf]
      %v287 = vld [vmem:[%s274 + $0x10] sm:$0xf]
      %v288 = vld [vmem:[%s274 + $0x14] sm:$0xf]
      %v289 = vld [vmem:[%s274 + $0x18] sm:$0xf]
      %v290 = vld [vmem:[%s274 + $0x1c] sm:$0xf]
      %v291 = vld [vmem:[%s274 + $0x20] sm:$0xf]
      %v292 = vld [vmem:[%s274 + $0x24] sm:$0xf]
      %v293 = vld [vmem:[%s274 + $0x28] sm:$0xf]
      %v294 = vld [vmem:[%s274 + $0x2c] sm:$0xf]
      %v295 = vld [vmem:[%s274 + $0x30] sm:$0xf]
      %v296 = vld [vmem:[%s274 + $0x34] sm:$0xf]
      %v297 = vld [vmem:[%s274 + $0x38] sm:$0xf]
      %v298 = vld [vmem:[%s274 + $0x3c] sm:$0xf]
      %v299 = vld [vmem:[%s1] sm:$0xf]
      %v300 = vld [vmem:[%s1 + $0x4] sm:$0xf]
      %v301 = vld [vmem:[%s1 + $0x8] sm:$0xf]
      %v302 = vld [vmem:[%s1 + $0xc] sm:$0xf]
      %v303 = vld [vmem:[%s2] sm:$0x1]
      %v305 = vperm.slane %v303, 0
      %v323 = vunpack.c.l.b16 %v283
      %v324 = vunpack.c.l.b16 %v284
      %v325 = vunpack.c.l.b16 %v285
      %v326 = vunpack.c.l.b16 %v286
      %v327 = vunpack.c.l.b16 %v287
      %v328 = vunpack.c.l.b16 %v288
      %v329 = vunpack.c.l.b16 %v289
      %v330 = vunpack.c.l.b16 %v290
      %v331 = vunpack.c.l.b16 %v291
      %v332 = vunpack.c.l.b16 %v292
      %v333 = vunpack.c.l.b16 %v293
      %v334 = vunpack.c.l.b16 %v294
      %v335 = vunpack.c.l.b16 %v295
      %v336 = vunpack.c.l.b16 %v296
      %v337 = vunpack.c.l.b16 %v297
      %v338 = vunpack.c.l.b16 %v298
      %v339 = vpack.c.b16 %v324, %v323
      %v340 = vpack.c.b16 %v326, %v325
      %v341 = vpack.c.b16 %v328, %v327
      %v342 = vpack.c.b16 %v330, %v329
      %v343 = vpack.c.b16 %v332, %v331
      %v344 = vpack.c.b16 %v334, %v333
      %v345 = vpack.c.b16 %v336, %v335
      %v346 = vpack.c.b16 %v338, %v337
      %v351 = vunpack.c.l.b16 %v299
      %v352 = vunpack.c.l.b16 %v300
      %v353 = vunpack.c.l.b16 %v301
      %v354 = vunpack.c.l.b16 %v302
      %v355 = vpack.c.b16 %v352, %v351
      %v356 = vpack.c.b16 %v354, %v353
      %vm359 = vcmask 261120
      %v361 = vsel %vm359, %v339, 0
      %v364 = vsel %vm359, %v340, 0
      %v367 = vsel %vm359, %v341, 0
      %v370 = vsel %vm359, %v342, 0
      %v373 = vsel %vm359, %v343, 0
      %v376 = vsel %vm359, %v344, 0
      %v379 = vsel %vm359, %v345, 0
      %v382 = vsel %vm359, %v346, 0
      %384 = vmatpush.bf16.msra.mxu0 0
      %385 = vmatpush.bf16.msra.mxu0 0
      %386 = vmatpush.bf16.msra.mxu0 0
      %387 = vmatpush.bf16.msra.mxu0 0
      %388 = vmatpush.bf16.msra.mxu0 0
      %389 = vmatpush.bf16.msra.mxu0 0
      %390 = vmatpush.bf16.msra.mxu0 %v356
      %391 = vmatpush.bf16.msra.mxu0 %v355
      %392 = vmatmul.bf16.gmra.mxu0 %v361
      %v393 = vpop.f32.mrf.mxu0
      %v394 = vadd.f32 %v305, %v393
      %v395 = vpop.f32.mrf.mxu0
      %v396 = vadd.f32 %v305, %v395
      %397 = vmatmul.bf16.gmra.mxu0 %v364
      %v398 = vpop.f32.mrf.mxu0
      %v399 = vadd.f32 %v305, %v398
      %v400 = vpop.f32.mrf.mxu0
      %v401 = vadd.f32 %v305, %v400
      %402 = vmatmul.bf16.gmra.mxu0 %v367
      %v403 = vpop.f32.mrf.mxu0
      %v404 = vadd.f32 %v305, %v403
      %v405 = vpop.f32.mrf.mxu0
      %v406 = vadd.f32 %v305, %v405
      %407 = vmatmul.bf16.gmra.mxu0 %v370
      %v408 = vpop.f32.mrf.mxu0
      %v409 = vadd.f32 %v305, %v408
      %v410 = vpop.f32.mrf.mxu0
      %v411 = vadd.f32 %v305, %v410
      %412 = vmatmul.bf16.gmra.mxu0 %v373
      %v413 = vpop.f32.mrf.mxu0
      %v414 = vadd.f32 %v305, %v413
      %v415 = vpop.f32.mrf.mxu0
      %v416 = vadd.f32 %v305, %v415
      %417 = vmatmul.bf16.gmra.mxu0 %v376
      %v418 = vpop.f32.mrf.mxu0
      %v419 = vadd.f32 %v305, %v418
      %v420 = vpop.f32.mrf.mxu0
      %v421 = vadd.f32 %v305, %v420
      %422 = vmatmul.bf16.gmra.mxu0 %v379
      %v423 = vpop.f32.mrf.mxu0
      %v424 = vadd.f32 %v305, %v423
      %v425 = vpop.f32.mrf.mxu0
      %v426 = vadd.f32 %v305, %v425
      %427 = vmatmul.bf16.gmra.mxu0 %v382
      %v428 = vpop.f32.mrf.mxu0
      %v429 = vadd.f32 %v305, %v428
      %v430 = vpop.f32.mrf.mxu0
      %v431 = vadd.f32 %v305, %v430
      %432 = vdwg.mxu0
      %v433 = vmax.f32 %v394, 0.0
      %v434 = vmax.f32 %v396, 0.0
      %v435 = vmax.f32 %v399, 0.0
      %v436 = vmax.f32 %v401, 0.0
      %v437 = vmax.f32 %v404, 0.0
      %v438 = vmax.f32 %v406, 0.0
      %v439 = vmax.f32 %v409, 0.0
      %v440 = vmax.f32 %v411, 0.0
      %v441 = vmax.f32 %v414, 0.0
      %v442 = vmax.f32 %v416, 0.0
      %v443 = vmax.f32 %v419, 0.0
      %v444 = vmax.f32 %v421, 0.0
      %v445 = vmax.f32 %v424, 0.0
      %v446 = vmax.f32 %v426, 0.0
      %v447 = vmax.f32 %v429, 0.0
      %v448 = vmax.f32 %v431, 0.0
      %v449 = vpack.c.bf16 %v434, %v433
      %v450 = vpack.c.bf16 %v436, %v435
      %v451 = vpack.c.bf16 %v438, %v437
      %v452 = vpack.c.bf16 %v440, %v439
      %v453 = vpack.c.bf16 %v442, %v441
      %v454 = vpack.c.bf16 %v444, %v443
      %v455 = vpack.c.bf16 %v446, %v445
      %v456 = vpack.c.bf16 %v448, %v447
      %v457 = vld [vmem:[%s3] sm:$0xf]
      %v458 = vld [vmem:[%s3 + $0x4] sm:$0xf]
      %v459 = vld [vmem:[%s3 + $0x8] sm:$0xf]
      %v460 = vld [vmem:[%s3 + $0xc] sm:$0xf]
      %v461 = vld [vmem:[%s3 + $0x10] sm:$0xf]
      %v462 = vld [vmem:[%s3 + $0x14] sm:$0xf]
      %v463 = vld [vmem:[%s3 + $0x18] sm:$0xf]
      %v464 = vld [vmem:[%s3 + $0x1c] sm:$0xf]
      %v465 = vld [vmem:[%s3 + $0x20] sm:$0xf]
      %v466 = vld [vmem:[%s3 + $0x24] sm:$0xf]
      %v467 = vld [vmem:[%s3 + $0x28] sm:$0xf]
      %v468 = vld [vmem:[%s3 + $0x2c] sm:$0xf]
      %v469 = vld [vmem:[%s3 + $0x30] sm:$0xf]
      %v470 = vld [vmem:[%s3 + $0x34] sm:$0xf]
      %v471 = vld [vmem:[%s3 + $0x38] sm:$0xf]
      %v472 = vld [vmem:[%s3 + $0x3c] sm:$0xf]
      %v473 = vld [vmem:[%s4] sm:$0x1]
      %v475 = vperm.slane %v473, 0
      %v493 = vunpack.c.l.b16 %v457
      %v494 = vunpack.c.l.b16 %v458
      %v495 = vunpack.c.l.b16 %v459
      %v496 = vunpack.c.l.b16 %v460
      %v497 = vunpack.c.l.b16 %v461
      %v498 = vunpack.c.l.b16 %v462
      %v499 = vunpack.c.l.b16 %v463
      %v500 = vunpack.c.l.b16 %v464
      %v501 = vunpack.c.l.b16 %v465
      %v502 = vunpack.c.l.b16 %v466
      %v503 = vunpack.c.l.b16 %v467
      %v504 = vunpack.c.l.b16 %v468
      %v505 = vunpack.c.l.b16 %v469
      %v506 = vunpack.c.l.b16 %v470
      %v507 = vunpack.c.l.b16 %v471
      %v508 = vunpack.c.l.b16 %v472
      %v509 = vpack.c.b16 %v494, %v493
      %v510 = vpack.c.b16 %v496, %v495
      %v511 = vpack.c.b16 %v498, %v497
      %v512 = vpack.c.b16 %v500, %v499
      %v513 = vpack.c.b16 %v502, %v501
      %v514 = vpack.c.b16 %v504, %v503
      %v515 = vpack.c.b16 %v506, %v505
      %v516 = vpack.c.b16 %v508, %v507
      %525 = vmatpush.bf16.msra.mxu0 %v516
      %526 = vmatpush.bf16.msra.mxu0 %v515
      %527 = vmatpush.bf16.msra.mxu0 %v514
      %528 = vmatpush.bf16.msra.mxu0 %v513
      %529 = vmatpush.bf16.msra.mxu0 %v512
      %530 = vmatpush.bf16.msra.mxu0 %v511
      %531 = vmatpush.bf16.msra.mxu0 %v510
      %532 = vmatpush.bf16.msra.mxu0 %v509
      %533 = vmatmul.bf16.gmra.mxu0 %v449
      %v534 = vpop.f32.mrf.mxu0
      %v535 = vadd.f32 %v475, %v534
      %v536 = vpop.f32.mrf.mxu0
      %v537 = vadd.f32 %v475, %v536
      %538 = vmatmul.bf16.gmra.mxu0 %v450
      %v539 = vpop.f32.mrf.mxu0
      %v540 = vadd.f32 %v475, %v539
      %v541 = vpop.f32.mrf.mxu0
      %v542 = vadd.f32 %v475, %v541
      %543 = vmatmul.bf16.gmra.mxu0 %v451
      %v544 = vpop.f32.mrf.mxu0
      %v545 = vadd.f32 %v475, %v544
      %v546 = vpop.f32.mrf.mxu0
      %v547 = vadd.f32 %v475, %v546
      %548 = vmatmul.bf16.gmra.mxu0 %v452
      %v549 = vpop.f32.mrf.mxu0
      %v550 = vadd.f32 %v475, %v549
      %v551 = vpop.f32.mrf.mxu0
      %v552 = vadd.f32 %v475, %v551
      %553 = vmatmul.bf16.gmra.mxu0 %v453
      %v554 = vpop.f32.mrf.mxu0
      %v555 = vadd.f32 %v475, %v554
      %v556 = vpop.f32.mrf.mxu0
      %v557 = vadd.f32 %v475, %v556
      %558 = vmatmul.bf16.gmra.mxu0 %v454
      %v559 = vpop.f32.mrf.mxu0
      %v560 = vadd.f32 %v475, %v559
      %v561 = vpop.f32.mrf.mxu0
      %v562 = vadd.f32 %v475, %v561
      %563 = vmatmul.bf16.gmra.mxu0 %v455
      %v564 = vpop.f32.mrf.mxu0
      %v565 = vadd.f32 %v475, %v564
      %v566 = vpop.f32.mrf.mxu0
      %v567 = vadd.f32 %v475, %v566
      %568 = vmatmul.bf16.gmra.mxu0 %v456
      %v569 = vpop.f32.mrf.mxu0
      %v570 = vadd.f32 %v475, %v569
      %v571 = vpop.f32.mrf.mxu0
      %v572 = vadd.f32 %v475, %v571
      %573 = vdwg.mxu0
      %v574 = vmax.f32 %v535, 0.0
      %v575 = vmax.f32 %v537, 0.0
      %v576 = vmax.f32 %v540, 0.0
      %v577 = vmax.f32 %v542, 0.0
      %v578 = vmax.f32 %v545, 0.0
      %v579 = vmax.f32 %v547, 0.0
      %v580 = vmax.f32 %v550, 0.0
      %v581 = vmax.f32 %v552, 0.0
      %v582 = vmax.f32 %v555, 0.0
      %v583 = vmax.f32 %v557, 0.0
      %v584 = vmax.f32 %v560, 0.0
      %v585 = vmax.f32 %v562, 0.0
      %v586 = vmax.f32 %v565, 0.0
      %v587 = vmax.f32 %v567, 0.0
      %v588 = vmax.f32 %v570, 0.0
      %v589 = vmax.f32 %v572, 0.0
      %v590 = vpack.c.bf16 %v575, %v574
      %v591 = vpack.c.bf16 %v577, %v576
      %v592 = vpack.c.bf16 %v579, %v578
      %v593 = vpack.c.bf16 %v581, %v580
      %v594 = vpack.c.bf16 %v583, %v582
      %v595 = vpack.c.bf16 %v585, %v584
      %v596 = vpack.c.bf16 %v587, %v586
      %v597 = vpack.c.bf16 %v589, %v588
      %v598 = vld [vmem:[%s5] sm:$0xf]
      %v599 = vld [vmem:[%s5 + $0x4] sm:$0xf]
      %v600 = vld [vmem:[%s5 + $0x8] sm:$0xf]
      %v601 = vld [vmem:[%s5 + $0xc] sm:$0xf]
      %v602 = vld [vmem:[%s5 + $0x10] sm:$0xf]
      %v603 = vld [vmem:[%s5 + $0x14] sm:$0xf]
      %v604 = vld [vmem:[%s5 + $0x18] sm:$0xf]
      %v605 = vld [vmem:[%s5 + $0x1c] sm:$0xf]
      %v606 = vld [vmem:[%s5 + $0x20] sm:$0xf]
      %v607 = vld [vmem:[%s5 + $0x24] sm:$0xf]
      %v608 = vld [vmem:[%s5 + $0x28] sm:$0xf]
      %v609 = vld [vmem:[%s5 + $0x2c] sm:$0xf]
      %v610 = vld [vmem:[%s5 + $0x30] sm:$0xf]
      %v611 = vld [vmem:[%s5 + $0x34] sm:$0xf]
      %v612 = vld [vmem:[%s5 + $0x38] sm:$0xf]
      %v613 = vld [vmem:[%s5 + $0x3c] sm:$0xf]
      %v614 = vld [vmem:[%s6] sm:$0x1]
      %v616 = vperm.slane %v614, 0
      %v634 = vunpack.c.l.b16 %v598
      %v635 = vunpack.c.l.b16 %v599
      %v636 = vunpack.c.l.b16 %v600
      %v637 = vunpack.c.l.b16 %v601
      %v638 = vunpack.c.l.b16 %v602
      %v639 = vunpack.c.l.b16 %v603
      %v640 = vunpack.c.l.b16 %v604
      %v641 = vunpack.c.l.b16 %v605
      %v642 = vunpack.c.l.b16 %v606
      %v643 = vunpack.c.l.b16 %v607
      %v644 = vunpack.c.l.b16 %v608
      %v645 = vunpack.c.l.b16 %v609
      %v646 = vunpack.c.l.b16 %v610
      %v647 = vunpack.c.l.b16 %v611
      %v648 = vunpack.c.l.b16 %v612
      %v649 = vunpack.c.l.b16 %v613
      %v650 = vpack.c.b16 %v635, %v634
      %v651 = vpack.c.b16 %v637, %v636
      %v652 = vpack.c.b16 %v639, %v638
      %v653 = vpack.c.b16 %v641, %v640
      %v654 = vpack.c.b16 %v643, %v642
      %v655 = vpack.c.b16 %v645, %v644
      %v656 = vpack.c.b16 %v647, %v646
      %v657 = vpack.c.b16 %v649, %v648
      %666 = vmatpush.bf16.msra.mxu0 %v657
      %667 = vmatpush.bf16.msra.mxu0 %v656
      %668 = vmatpush.bf16.msra.mxu0 %v655
      %669 = vmatpush.bf16.msra.mxu0 %v654
      %670 = vmatpush.bf16.msra.mxu0 %v653
      %671 = vmatpush.bf16.msra.mxu0 %v652
      %672 = vmatpush.bf16.msra.mxu0 %v651
      %673 = vmatpush.bf16.msra.mxu0 %v650
      %674 = vmatmul.bf16.gmra.mxu0 %v590
      %v675 = vpop.f32.mrf.mxu0
      %v676 = vadd.f32 %v616, %v675
      %v677 = vpop.f32.mrf.mxu0
      %v678 = vadd.f32 %v616, %v677
      %679 = vmatmul.bf16.gmra.mxu0 %v591
      %v680 = vpop.f32.mrf.mxu0
      %v681 = vadd.f32 %v616, %v680
      %v682 = vpop.f32.mrf.mxu0
      %v683 = vadd.f32 %v616, %v682
      %684 = vmatmul.bf16.gmra.mxu0 %v592
      %v685 = vpop.f32.mrf.mxu0
      %v686 = vadd.f32 %v616, %v685
      %v687 = vpop.f32.mrf.mxu0
      %v688 = vadd.f32 %v616, %v687
      %689 = vmatmul.bf16.gmra.mxu0 %v593
      %v690 = vpop.f32.mrf.mxu0
      %v691 = vadd.f32 %v616, %v690
      %v692 = vpop.f32.mrf.mxu0
      %v693 = vadd.f32 %v616, %v692
      %694 = vmatmul.bf16.gmra.mxu0 %v594
      %v695 = vpop.f32.mrf.mxu0
      %v696 = vadd.f32 %v616, %v695
      %v697 = vpop.f32.mrf.mxu0
      %v698 = vadd.f32 %v616, %v697
      %699 = vmatmul.bf16.gmra.mxu0 %v595
      %v700 = vpop.f32.mrf.mxu0
      %v701 = vadd.f32 %v616, %v700
      %v702 = vpop.f32.mrf.mxu0
      %v703 = vadd.f32 %v616, %v702
      %704 = vmatmul.bf16.gmra.mxu0 %v596
      %v705 = vpop.f32.mrf.mxu0
      %v706 = vadd.f32 %v616, %v705
      %v707 = vpop.f32.mrf.mxu0
      %v708 = vadd.f32 %v616, %v707
      %709 = vmatmul.bf16.gmra.mxu0 %v597
      %v710 = vpop.f32.mrf.mxu0
      %v711 = vadd.f32 %v616, %v710
      %v712 = vpop.f32.mrf.mxu0
      %v713 = vadd.f32 %v616, %v712
      %714 = vdwg.mxu0
      %715 = vmax.xlane.f32.xlu0 %v676
      %v716 = vpop.xlane.xlu0 %715
      %717 = vmax.xlane.f32.xlu0 %v678
      %v718 = vpop.xlane.xlu0 %717
      %719 = vmax.xlane.f32.xlu0 %v681
      %v720 = vpop.xlane.xlu0 %719
      %721 = vmax.xlane.f32.xlu0 %v683
      %v722 = vpop.xlane.xlu0 %721
      %723 = vmax.xlane.f32.xlu0 %v686
      %v724 = vpop.xlane.xlu0 %723
      %725 = vmax.xlane.f32.xlu0 %v688
      %v726 = vpop.xlane.xlu0 %725
      %727 = vmax.xlane.f32.xlu0 %v691
      %v728 = vpop.xlane.xlu0 %727
      %729 = vmax.xlane.f32.xlu0 %v693
      %v730 = vpop.xlane.xlu0 %729
      %731 = vmax.xlane.f32.xlu0 %v696
      %v732 = vpop.xlane.xlu0 %731
      %733 = vmax.xlane.f32.xlu0 %v698
      %v734 = vpop.xlane.xlu0 %733
      %735 = vmax.xlane.f32.xlu0 %v701
      %v736 = vpop.xlane.xlu0 %735
      %737 = vmax.xlane.f32.xlu0 %v703
      %v738 = vpop.xlane.xlu0 %737
      %739 = vmax.xlane.f32.xlu0 %v706
      %v740 = vpop.xlane.xlu0 %739
      %741 = vmax.xlane.f32.xlu0 %v708
      %v742 = vpop.xlane.xlu0 %741
      %743 = vmax.xlane.f32.xlu0 %v711
      %v744 = vpop.xlane.xlu0 %743
      %745 = vmax.xlane.f32.xlu0 %v713
      %v746 = vpop.xlane.xlu0 %745
      %v747 = vsub.f32 %v676, %v716
      %v748 = vsub.f32 %v678, %v718
      %v749 = vsub.f32 %v681, %v720
      %v750 = vsub.f32 %v683, %v722
      %v751 = vsub.f32 %v686, %v724
      %v752 = vsub.f32 %v688, %v726
      %v753 = vsub.f32 %v691, %v728
      %v754 = vsub.f32 %v693, %v730
      %v755 = vsub.f32 %v696, %v732
      %v756 = vsub.f32 %v698, %v734
      %v757 = vsub.f32 %v701, %v736
      %v758 = vsub.f32 %v703, %v738
      %v759 = vsub.f32 %v706, %v740
      %v760 = vsub.f32 %v708, %v742
      %v761 = vsub.f32 %v711, %v744
      %v762 = vsub.f32 %v713, %v746
      %v763 = vmul.f32 %v747, 1.442695
      %v764 = vpow.pop %v763
      %v765 = vmul.f32 %v748, 1.442695
      %v766 = vpow.pop %v765
      %v767 = vmul.f32 %v749, 1.442695
      %v768 = vpow.pop %v767
      %v769 = vmul.f32 %v750, 1.442695
      %v770 = vpow.pop %v769
      %v771 = vmul.f32 %v751, 1.442695
      %v772 = vpow.pop %v771
      %v773 = vmul.f32 %v752, 1.442695
      %v774 = vpow.pop %v773
      %v775 = vmul.f32 %v753, 1.442695
      %v776 = vpow.pop %v775
      %v777 = vmul.f32 %v754, 1.442695
      %v778 = vpow.pop %v777
      %v779 = vmul.f32 %v755, 1.442695
      %v780 = vpow.pop %v779
      %v781 = vmul.f32 %v756, 1.442695
      %v782 = vpow.pop %v781
      %v783 = vmul.f32 %v757, 1.442695
      %v784 = vpow.pop %v783
      %v785 = vmul.f32 %v758, 1.442695
      %v786 = vpow.pop %v785
      %v787 = vmul.f32 %v759, 1.442695
      %v788 = vpow.pop %v787
      %v789 = vmul.f32 %v760, 1.442695
      %v790 = vpow.pop %v789
      %v791 = vmul.f32 %v761, 1.442695
      %v792 = vpow.pop %v791
      %v793 = vmul.f32 %v762, 1.442695
      %v794 = vpow.pop %v793
      %795 = vadd.xlane.f32.xlu0 %v764
      %v796 = vpop.xlane.xlu0 %795
      %797 = vadd.xlane.f32.xlu0 %v766
      %v798 = vpop.xlane.xlu0 %797
      %799 = vadd.xlane.f32.xlu0 %v768
      %v800 = vpop.xlane.xlu0 %799
      %801 = vadd.xlane.f32.xlu0 %v770
      %v802 = vpop.xlane.xlu0 %801
      %803 = vadd.xlane.f32.xlu0 %v772
      %v804 = vpop.xlane.xlu0 %803
      %805 = vadd.xlane.f32.xlu0 %v774
      %v806 = vpop.xlane.xlu0 %805
      %807 = vadd.xlane.f32.xlu0 %v776
      %v808 = vpop.xlane.xlu0 %807
      %809 = vadd.xlane.f32.xlu0 %v778
      %v810 = vpop.xlane.xlu0 %809
      %811 = vadd.xlane.f32.xlu0 %v780
      %v812 = vpop.xlane.xlu0 %811
      %813 = vadd.xlane.f32.xlu0 %v782
      %v814 = vpop.xlane.xlu0 %813
      %815 = vadd.xlane.f32.xlu0 %v784
      %v816 = vpop.xlane.xlu0 %815
      %817 = vadd.xlane.f32.xlu0 %v786
      %v818 = vpop.xlane.xlu0 %817
      %819 = vadd.xlane.f32.xlu0 %v788
      %v820 = vpop.xlane.xlu0 %819
      %821 = vadd.xlane.f32.xlu0 %v790
      %v822 = vpop.xlane.xlu0 %821
      %823 = vadd.xlane.f32.xlu0 %v792
      %v824 = vpop.xlane.xlu0 %823
      %825 = vadd.xlane.f32.xlu0 %v794
      %v826 = vpop.xlane.xlu0 %825
      %v827 = vrcp.pop %v796
      %v828 = vrcp.pop %v798
      %v829 = vrcp.pop %v800
      %v830 = vrcp.pop %v802
      %v831 = vrcp.pop %v804
      %v832 = vrcp.pop %v806
      %v833 = vrcp.pop %v808
      %v834 = vrcp.pop %v810
      %v835 = vrcp.pop %v812
      %v836 = vrcp.pop %v814
      %v837 = vrcp.pop %v816
      %v838 = vrcp.pop %v818
      %v839 = vrcp.pop %v820
      %v840 = vrcp.pop %v822
      %v841 = vrcp.pop %v824
      %v842 = vrcp.pop %v826
      %v843 = vmul.f32 %v764, %v827
      %v844 = vmul.f32 %v766, %v828
      %v845 = vmul.f32 %v768, %v829
      %v846 = vmul.f32 %v770, %v830
      %v847 = vmul.f32 %v772, %v831
      %v848 = vmul.f32 %v774, %v832
      %v849 = vmul.f32 %v776, %v833
      %v850 = vmul.f32 %v778, %v834
      %v851 = vmul.f32 %v780, %v835
      %v852 = vmul.f32 %v782, %v836
      %v853 = vmul.f32 %v784, %v837
      %v854 = vmul.f32 %v786, %v838
      %v855 = vmul.f32 %v788, %v839
      %v856 = vmul.f32 %v790, %v840
      %v857 = vmul.f32 %v792, %v841
      %v858 = vmul.f32 %v794, %v842
      %859 = vst [vmem:[%s280] sm:$0xff] %v843
      %860 = vst [vmem:[%s280 + $0x8] sm:$0xff] %v844
      %861 = vst [vmem:[%s280 + $0x10] sm:$0xff] %v845
      %862 = vst [vmem:[%s280 + $0x18] sm:$0xff] %v846
      %863 = vst [vmem:[%s280 + $0x20] sm:$0xff] %v847
      %864 = vst [vmem:[%s280 + $0x28] sm:$0xff] %v848
      %865 = vst [vmem:[%s280 + $0x30] sm:$0xff] %v849
      %866 = vst [vmem:[%s280 + $0x38] sm:$0xff] %v850
      %867 = vst [vmem:[%s280 + $0x40] sm:$0xff] %v851
      %868 = vst [vmem:[%s280 + $0x48] sm:$0xff] %v852
      %869 = vst [vmem:[%s280 + $0x50] sm:$0xff] %v853
      %870 = vst [vmem:[%s280 + $0x58] sm:$0xff] %v854
      %871 = vst [vmem:[%s280 + $0x60] sm:$0xff] %v855
      %872 = vst [vmem:[%s280 + $0x68] sm:$0xff] %v856
      %873 = vst [vmem:[%s280 + $0x70] sm:$0xff] %v857
      %874 = vst [vmem:[%s280 + $0x78] sm:$0xff] %v858
      %s875 = smul.u32 16, %s18
      %p876 = scmp.lt.s32.totalorder %s875, 31
      %s877 = scalar_select %p876, %s875, 31
      %s878 = smul.addr %s877, 8
      %s879 = scalar_lea.vmem %s7, %s878
      // Predicated region
      $region49: #{mlp_forward.1} parent=47 // pred_check
        %p880 = pneg %p188
      $region50: #{mlp_forward.1} parent=47 // pred_check_branch
        %882 = sbr.rel (%p880) target = $region52
      $region51: #{mlp_forward.1} parent=47 // pred_region
        %s883 = smul.u32 16, %s18
      $region52: #{mlp_forward.1} parent=47 // pred_fallthru
        _
    $region48: #{mlp_forward.1} parent=5 // pred_fallthru
      _
    %p884 = scmp.le.s32.totalorder 2, %s13
    // Predicated region
    $region53: #{mlp_forward.1} parent=5 // pred_check
      %p885 = pneg %p884
    $region54: #{mlp_forward.1} parent=5 // pred_check_branch
      %887 = sbr.rel (%p885) target = $region56
    $region55: #{mlp_forward.1} parent=5 // pred_region
      %s888 = ssub.s32 %s13, 2
      // Predicated region
      $region57: #{mlp_forward.1} parent=55 // pred_check
        %p889 = pneg %p194
      $region58: #{mlp_forward.1} parent=55 // pred_check_branch
        %891 = sbr.rel (%p889) target = $region60
      $region59: #{mlp_forward.1} parent=55 // pred_region
        %s892 = smul.u32 16, %s19
        %p893 = scmp.lt.s32.totalorder %s892, 31
        %s894 = scalar_select %p893, %s892, 31
        %s895 = smul.addr %s894, 8
        %s896 = scalar_lea.vmem %s7, %s895
      $region60: #{mlp_forward.1} parent=55 // pred_fallthru
        _
    $region56: #{mlp_forward.1} parent=5 // pred_fallthru
      _
  $region6: #{mlp_forward.1} parent=0 // loop_footer
    %s17 = sadd.s32 1, %s13
  $region7: #{mlp_forward.1} parent=0 // loop_footer_branch
    %12 = sbr.rel target = $region3
  $region8: #{mlp_forward.1} parent=0 // loop_exit
    _

</llo_original>
